<compile_context>
chip_gen: v6e
topology: v6e:2x2x1
jax: 0.10.0
libtpu: 0.0.40
codegen_flags: <defaults>
</compile_context>

<pallas_src>
import functools

import jax
import jax.numpy as jnp
from jax import lax
from jax.experimental import pallas as pl
from jax.experimental.pallas import tpu as pltpu

_LANES = 128
_CHUNK_ROWS = 4096  # (4096, 128) f32 tile = 2 MiB per input per pipeline buffer.


@functools.lru_cache(maxsize=1)
def _num_tensorcores():
    """Best-effort TensorCores-per-chip count (v7x=2, v5e/v6e=1)."""
    try:
        info = pltpu.get_tpu_info()
        for attr in ("num_cores", "cores_per_chip", "core_count",
                     "num_tensorcores", "tensorcore_count"):
            v = getattr(info, attr, None)
            if isinstance(v, int) and v > 0:
                return v
    except Exception:  # probe must never break the kernel
        pass
    # Unknown part: assume 2 TCs.  With the uneven split this is near-free on
    # 1-TC chips (one gated-off grid step, no duplicated chunk traffic).
    return 2


def _dice_partial_kernel(o_ref, t_ref, inter_ref, union_ref, *,
                         rows_total, tr, acc_rows, groups,
                         count0, count1, total_chunks, ragged, has_overhang):
    """Accumulate per-(batch,group) partial sums of sigmoid(o)*t and sigmoid(o)+t."""
    r = pl.program_id(1)

    @pl.when(r == 0)
    def _init():
        inter_ref[...] = jnp.zeros_like(inter_ref)
        union_ref[...] = jnp.zeros_like(union_ref)

    def _body(mask_rows):
        # f32 compute everywhere (narrow dtypes are storage-only).
        s = jax.nn.sigmoid(o_ref[...].astype(jnp.float32))
        t = t_ref[...].astype(jnp.float32)
        prod = s * t   # -> intersection
        both = s + t   # -> sum(s) + sum(t), fused into one reduction stream
        if mask_rows:
            # Only the ragged last chunk ever takes this path.
            valid_rows = rows_total - (total_chunks - 1) * tr
            rid = lax.broadcasted_iota(jnp.int32, (tr, _LANES), 0)
            valid = rid < valid_rows
            prod = jnp.where(valid, prod, 0.0)
            both = jnp.where(valid, both, 0.0)
        if acc_rows == 8:
            # Collapse only the vreg-major axis: pure VPU adds, no XLU work,
            # no scalar extraction inside the hot loop.
            inter_ref[...] += prod.reshape(tr // 8, 8, _LANES).sum(axis=0)
            union_ref[...] += both.reshape(tr // 8, 8, _LANES).sum(axis=0)
        else:
            # Tiny-image path (row count not a multiple of 8).
            inter_ref[...] += jnp.sum(prod, axis=0, keepdims=True)
            union_ref[...] += jnp.sum(both, axis=0, keepdims=True)

    # Scalar bookkeeping: which chunk this grid step owns and whether it is a
    # real (non-overhang) step of its group.
    if groups == 1:
        chunk = r
        in_group = None                                   # statically true
    else:
        g = pl.program_id(0) % groups
        chunk = g * count0 + r
        if has_overhang:
            in_group = r < count0 + g * (count1 - count0)  # r < count_g
        else:
            in_group = None

    if not ragged and in_group is None:
        _body(False)                                      # pure fast path
    elif not ragged:
        pl.when(in_group)(lambda: _body(False))
    else:
        is_last = chunk == (total_chunks - 1)
        fast_cond = jnp.logical_not(is_last)
        mask_cond = is_last
        if in_group is not None:
            fast_cond = jnp.logical_and(in_group, fast_cond)
            mask_cond = jnp.logical_and(in_group, mask_cond)
        pl.when(fast_cond)(lambda: _body(False))
        pl.when(mask_cond)(lambda: _body(True))


def dice_loss(outputs, targets, *, per_image=False, eps=1e-6,
              chunk_rows=_CHUNK_ROWS, _force_groups=None):
    """Pallas equivalent of DiceLoss.forward (the unused `weight` buffer is ignored)."""
    assert outputs.shape == targets.shape
    n = outputs.shape[0]
    batch_size = n if per_image else 1
    total = outputs.size
    per_row = total // batch_size

    # .view(batch_size, -1): metadata-only reshape for contiguous inputs.
    o2 = outputs.reshape(batch_size, per_row)
    t2 = targets.reshape(batch_size, per_row)

    if per_row % _LANES == 0:
        rows = per_row // _LANES  # no pad, no copy
    else:
        # Rare ragged-lane fallback: neutral pad (sigmoid(-inf) == 0, target 0).
        # TODO(synk): in-kernel lane masking would avoid this HBM copy.
        rows = pl.cdiv(per_row, _LANES)
        pad = rows * _LANES - per_row
        o2 = jnp.pad(o2, ((0, 0), (0, pad)), constant_values=-jnp.inf)
        t2 = jnp.pad(t2, ((0, 0), (0, pad)), constant_values=0)

    o3 = o2.reshape(batch_size, rows, _LANES)
    t3 = t2.reshape(batch_size, rows, _LANES)

    # Stream the row axis in large chunks so each grid step moves multiple MiB
    # of HBM and DMA overlaps compute; VMEM stays O(tr * 128).
    tr = rows if rows <= chunk_rows else chunk_rows
    total_chunks = pl.cdiv(rows, tr)

    # Single logical image on a multi-TC part: split the chunk range unevenly
    # into two independent groups so both TensorCores get work.
    if _force_groups is not None:
        groups = _force_groups if (batch_size == 1 and total_chunks >= 2) else 1
    else:
        groups = 2 if (batch_size == 1 and total_chunks >= 2
                       and _num_tensorcores() >= 2) else 1

    if groups == 2:
        count0 = (total_chunks + 1) // 2      # group 0 takes the remainder chunk
        count1 = total_chunks - count0
    else:
        count0, count1 = total_chunks, 0
    cpg = count0                              # grid extent along the chunk axis
    has_overhang = groups == 2 and count0 != count1
    ragged = total_chunks * tr != rows

    acc_rows = 8 if tr % 8 == 0 else 1
    bg = batch_size * groups

    if groups == 1:
        def in_map(i, r):
            return (i, r, 0)
    else:
        def in_map(i, r):
            b = i // groups
            g = i % groups
            # Group g owns chunks [g*count0, g*count0 + count_g).  The short
            # group's overhang step clamps to its last chunk (same block index
            # as the previous step -> the pipeline elides the DMA) and its
            # accumulation is gated off in-kernel.
            c = g * count0 + jnp.minimum(r, count0 - 1 + g * (count1 - count0))
            return (b, c, 0)

    out_map = lambda i, r: (i, 0, 0)

    kernel = functools.partial(
        _dice_partial_kernel,
        rows_total=rows, tr=tr, acc_rows=acc_rows, groups=groups,
        count0=count0, count1=count1, total_chunks=total_chunks,
        ragged=ragged, has_overhang=has_overhang)

    inter_p, union_p = pl.pallas_call(
        kernel,
        out_shape=(
            jax.ShapeDtypeStruct((bg, acc_rows, _LANES), jnp.float32),
            jax.ShapeDtypeStruct((bg, acc_rows, _LANES), jnp.float32),
        ),
        grid_spec=pltpu.PrefetchScalarGridSpec(
            num_scalar_prefetch=0,
            grid=(bg, cpg),
            in_specs=[
                pl.BlockSpec((None, tr, _LANES), in_map),
                pl.BlockSpec((None, tr, _LANES), in_map),
            ],
            out_specs=[
                pl.BlockSpec((None, acc_rows, _LANES), out_map),
                pl.BlockSpec((None, acc_rows, _LANES), out_map),
            ],
        ),
        compiler_params=pltpu.CompilerParams(
            dimension_semantics=("parallel", "arbitrary"),
            vmem_limit_bytes=32 * 1024 * 1024,
        ),
    )(o3, t3)

    # Cheap epilogue: cross-lane reduce of the (acc_rows,128) partials and the
    # dice formula over batch_size values, matching torch's `.mean()`.
    inter = inter_p.reshape(batch_size, -1).sum(axis=1)
    union = union_p.reshape(batch_size, -1).sum(axis=1) + eps
    return jnp.mean(1.0 - (2.0 * inter + eps) / union)


def _dice_loss_ref(outputs, targets, *, per_image=False, eps=1e-6):
    """Pure-JAX reference mirroring the PyTorch forward."""
    s = jax.nn.sigmoid(outputs.astype(jnp.float32))
    b = outputs.shape[0] if per_image else 1
    do = s.reshape(b, -1)
    dt = targets.reshape(b, -1).astype(jnp.float32)
    inter = jnp.sum(do * dt, axis=1)
    union = jnp.sum(do, axis=1) + jnp.sum(dt, axis=1) + eps
    return jnp.mean(1.0 - (2.0 * inter + eps) / union)


if __name__ == "__main__":
    keys = jax.random.split(jax.random.PRNGKey(0), 8)

    # Small (N, C, H, W) segmentation-head shaped inputs.  Targets stored
    # narrow (bf16 0/1) in HBM; the kernel upcasts in VMEM.
    outputs = jax.random.normal(keys[0], (2, 4, 16, 16), dtype=jnp.float32)
    targets = (jax.random.uniform(keys[1], (2, 4, 16, 16)) > 0.5).astype(jnp.bfloat16)

    for per_image in (False, True):
        loss = dice_loss(outputs, targets, per_image=per_image)
        jax.block_until_ready(loss)
        ref = _dice_loss_ref(outputs, targets, per_image=per_image)
        assert jnp.allclose(loss, ref, atol=1e-5, rtol=1e-5), (per_image, loss, ref)

    # Multi-chunk streaming + ragged-row-tail mask + uneven 2-group split,
    # exercised at a small shape by overriding the chunk size
    # (75 rows -> chunks of 32: [0,1] on group 0, [2]+overhang on group 1).
    o_c = jax.random.normal(keys[2], (1, 6, 40, 40), dtype=jnp.float32)
    t_c = (jax.random.uniform(keys[3], (1, 6, 40, 40)) > 0.5).astype(jnp.bfloat16)
    loss_c = dice_loss(o_c, t_c, per_image=False, chunk_rows=32, _force_groups=2)
    jax.block_until_ready(loss_c)
    ref_c = _dice_loss_ref(o_c, t_c, per_image=False)
    assert jnp.allclose(loss_c, ref_c, atol=1e-5, rtol=1e-5), (loss_c, ref_c)

    # per_image=True with multiple chunks per image (75 rows -> 2 chunks of 64).
    o_p = jax.random.normal(keys[4], (2, 6, 40, 40), dtype=jnp.float32)
    t_p = (jax.random.uniform(keys[5], (2, 6, 40, 40)) > 0.5).astype(jnp.bfloat16)
    loss_p = dice_loss(o_p, t_p, per_image=True, chunk_rows=64)
    jax.block_until_ready(loss_p)
    ref_p = _dice_loss_ref(o_p, t_p, per_image=True)
    assert jnp.allclose(loss_p, ref_p, atol=1e-5, rtol=1e-5), (loss_p, ref_p)

    # Ragged-lane fallback (per_row % 128 != 0 -> neutral pad path).
    o_r = jax.random.normal(keys[6], (1, 3, 10, 10), dtype=jnp.float32)
    t_r = (jax.random.uniform(keys[7], (1, 3, 10, 10)) > 0.5).astype(jnp.float32)
    loss_r = dice_loss(o_r, t_r, per_image=False)
    jax.block_until_ready(loss_r)
    ref_r = _dice_loss_ref(o_r, t_r, per_image=False)
    assert jnp.allclose(loss_r, ref_r, atol=1e-5, rtol=1e-5), (loss_r, ref_r)

    print("KERNEL_OK")
</pallas_src>

<mosaic_0001>
module attributes {stable_mosaic.version = 11 : i64} {
  func.func @_dice_partial_kernel(%arg0: i32, %arg1: i32, %arg2: memref<1x16x128xf32, #tpu.memory_space<vmem>>, %arg3: memref<1x16x128xbf16, #tpu.memory_space<vmem>>, %arg4: memref<1x8x128xf32, #tpu.memory_space<vmem>>, %arg5: memref<1x8x128xf32, #tpu.memory_space<vmem>>) attributes {dimension_semantics = [#tpu.dimension_semantics<parallel>, #tpu.dimension_semantics<arbitrary>], iteration_bounds = array<i64: 1, 1>, scalar_prefetch = 0 : i64, scratch_operands = 0 : i64, tpu.core_type = #tpu.core_type<tc>, window_params = [{transform_indices = @transform_0, window_bounds = array<i64: 1, 16, 128>}, {transform_indices = @transform_1, window_bounds = array<i64: 1, 16, 128>}, {transform_indices = @transform_2, window_bounds = array<i64: 1, 8, 128>}, {transform_indices = @transform_3, window_bounds = array<i64: 1, 8, 128>}]} {
    %c0_i32 = arith.constant 0 : i32
    %0 = arith.cmpi eq, %arg1, %c0_i32 : i32
    %1 = arith.extui %0 : i1 to i32
    %c0_i32_0 = arith.constant 0 : i32
    %2 = arith.cmpi ne, %1, %c0_i32_0 : i32
    scf.if %2 {
      %cst_20 = arith.constant 0.000000e+00 : f32
      %31 = vector.broadcast %cst_20 : f32 to vector<8x128xf32>
      %c0_21 = arith.constant 0 : index
      %c0_22 = arith.constant 0 : index
      %c0_23 = arith.constant 0 : index
      %32 = vector.load %arg4[%c0_21, %c0_22, %c0_23] : memref<1x8x128xf32, #tpu.memory_space<vmem>>, vector<1x8x128xf32>
      %33 = vector.shape_cast %32 : vector<1x8x128xf32> to vector<8x128xf32>
      %34 = vector.shape_cast %31 : vector<8x128xf32> to vector<1x8x128xf32>
      tpu.vector_store %arg4[%c0_21, %c0_22, %c0_23], %34 {strides = array<i32>} : memref<1x8x128xf32, #tpu.memory_space<vmem>>, vector<1x8x128xf32>,
      %cst_24 = arith.constant 0.000000e+00 : f32
      %35 = vector.broadcast %cst_24 : f32 to vector<8x128xf32>
      %c0_25 = arith.constant 0 : index
      %c0_26 = arith.constant 0 : index
      %c0_27 = arith.constant 0 : index
      %36 = vector.load %arg5[%c0_25, %c0_26, %c0_27] : memref<1x8x128xf32, #tpu.memory_space<vmem>>, vector<1x8x128xf32>
      %37 = vector.shape_cast %36 : vector<1x8x128xf32> to vector<8x128xf32>
      %38 = vector.shape_cast %35 : vector<8x128xf32> to vector<1x8x128xf32>
      tpu.vector_store %arg5[%c0_25, %c0_26, %c0_27], %38 {strides = array<i32>} : memref<1x8x128xf32, #tpu.memory_space<vmem>>, vector<1x8x128xf32>,
    } else {
    }
    %c0 = arith.constant 0 : index
    %c0_1 = arith.constant 0 : index
    %c0_2 = arith.constant 0 : index
    %3 = vector.load %arg2[%c0, %c0_1, %c0_2] : memref<1x16x128xf32, #tpu.memory_space<vmem>>, vector<1x16x128xf32>
    %4 = vector.shape_cast %3 : vector<1x16x128xf32> to vector<16x128xf32>
    %5 = arith.negf %4 : vector<16x128xf32>
    %6 = math.exp %5 : vector<16x128xf32>
    %cst = arith.constant 1.000000e+00 : f32
    %7 = vector.broadcast %cst : f32 to vector<16x128xf32>
    %8 = arith.addf %7, %6 : vector<16x128xf32>
    %9 = arith.divf %7, %8 : vector<16x128xf32>
    %c0_3 = arith.constant 0 : index
    %c0_4 = arith.constant 0 : index
    %c0_5 = arith.constant 0 : index
    %10 = vector.load %arg3[%c0_3, %c0_4, %c0_5] : memref<1x16x128xbf16, #tpu.memory_space<vmem>>, vector<1x16x128xbf16>
    %11 = vector.shape_cast %10 : vector<1x16x128xbf16> to vector<16x128xbf16>
    %12 = arith.extf %11 : vector<16x128xbf16> to vector<16x128xf32>
    %13 = arith.mulf %9, %12 : vector<16x128xf32>
    %14 = arith.addf %9, %12 : vector<16x128xf32>
    %c0_6 = arith.constant 0 : index
    %c0_7 = arith.constant 0 : index
    %c0_8 = arith.constant 0 : index
    %15 = vector.load %arg4[%c0_6, %c0_7, %c0_8] : memref<1x8x128xf32, #tpu.memory_space<vmem>>, vector<1x8x128xf32>
    %16 = vector.shape_cast %15 : vector<1x8x128xf32> to vector<8x128xf32>
    %17 = vector.shape_cast %13 : vector<16x128xf32> to vector<2x8x128xf32>
    %cst_9 = arith.constant dense<0.000000e+00> : vector<8x128xf32>
    %18 = vector.multi_reduction <add>, %17, %cst_9 [0] : vector<2x8x128xf32> to vector<8x128xf32>
    %19 = arith.addf %16, %18 : vector<8x128xf32>
    %c0_10 = arith.constant 0 : index
    %c0_11 = arith.constant 0 : index
    %c0_12 = arith.constant 0 : index
    %20 = vector.load %arg4[%c0_10, %c0_11, %c0_12] : memref<1x8x128xf32, #tpu.memory_space<vmem>>, vector<1x8x128xf32>
    %21 = vector.shape_cast %20 : vector<1x8x128xf32> to vector<8x128xf32>
    %22 = vector.shape_cast %19 : vector<8x128xf32> to vector<1x8x128xf32>
    tpu.vector_store %arg4[%c0_10, %c0_11, %c0_12], %22 {strides = array<i32>} : memref<1x8x128xf32, #tpu.memory_space<vmem>>, vector<1x8x128xf32>,
    %c0_13 = arith.constant 0 : index
    %c0_14 = arith.constant 0 : index
    %c0_15 = arith.constant 0 : index
    %23 = vector.load %arg5[%c0_13, %c0_14, %c0_15] : memref<1x8x128xf32, #tpu.memory_space<vmem>>, vector<1x8x128xf32>
    %24 = vector.shape_cast %23 : vector<1x8x128xf32> to vector<8x128xf32>
    %25 = vector.shape_cast %14 : vector<16x128xf32> to vector<2x8x128xf32>
    %cst_16 = arith.constant dense<0.000000e+00> : vector<8x128xf32>
    %26 = vector.multi_reduction <add>, %25, %cst_16 [0] : vector<2x8x128xf32> to vector<8x128xf32>
    %27 = arith.addf %24, %26 : vector<8x128xf32>
    %c0_17 = arith.constant 0 : index
    %c0_18 = arith.constant 0 : index
    %c0_19 = arith.constant 0 : index
    %28 = vector.load %arg5[%c0_17, %c0_18, %c0_19] : memref<1x8x128xf32, #tpu.memory_space<vmem>>, vector<1x8x128xf32>
    %29 = vector.shape_cast %28 : vector<1x8x128xf32> to vector<8x128xf32>
    %30 = vector.shape_cast %27 : vector<8x128xf32> to vector<1x8x128xf32>
    tpu.vector_store %arg5[%c0_17, %c0_18, %c0_19], %30 {strides = array<i32>} : memref<1x8x128xf32, #tpu.memory_space<vmem>>, vector<1x8x128xf32>,
    return
  }
  func.func @transform_0(%arg0: i32, %arg1: i32) -> (i32, i32, i32) {
    %c0_i32 = arith.constant 0 : i32
    %c0_i32_0 = arith.constant 0 : i32
    return %arg0, %arg1, %c0_i32 : i32, i32, i32
  }
  func.func @transform_1(%arg0: i32, %arg1: i32) -> (i32, i32, i32) {
    %c0_i32 = arith.constant 0 : i32
    %c0_i32_0 = arith.constant 0 : i32
    return %arg0, %arg1, %c0_i32 : i32, i32, i32
  }
  func.func @transform_2(%arg0: i32, %arg1: i32) -> (i32, i32, i32) {
    %c0_i32 = arith.constant 0 : i32
    %c0_i32_0 = arith.constant 0 : i32
    %c0_i32_1 = arith.constant 0 : i32
    return %arg0, %c0_i32, %c0_i32_0 : i32, i32, i32
  }
  func.func @transform_3(%arg0: i32, %arg1: i32) -> (i32, i32, i32) {
    %c0_i32 = arith.constant 0 : i32
    %c0_i32_0 = arith.constant 0 : i32
    %c0_i32_1 = arith.constant 0 : i32
    return %arg0, %c0_i32, %c0_i32_0 : i32, i32, i32
  }
}

</mosaic_0001>

<llo_original>
// kernel: tpu_custom_call.1
$region0: #{tpu_custom_call.1}
  #allocation0 [shape = 'u32[]', space=smem, size = 0x4, offset = 0x4, fixed_abs, tag = 'smem constant byte address 0x4 - core index']
  #allocation1 [shape = 'u32[144,128]{1,0:T(1,128)}', space=vmem, size = 0x12000, scoped, tag = 'internal scratch']
  %s0 = inlined_call_operand.hbm [shape: f32[1,16,128], index: 0, kind: input, shape index: {}]
  %s1 = inlined_call_operand.hbm [shape: bf16[1,16,128], index: 1, kind: input, shape index: {}]
  %s2 = inlined_call_operand.hbm [shape: f32[1,8,128], index: 2, kind: output, shape index: {0}]
  %s3 = inlined_call_operand.hbm [shape: f32[1,8,128], index: 3, kind: output, shape index: {1}]
  %4 = xla_tuple %s2, %s3
  %s5 = sld [smem:[#allocation0]]
  $region38: #{tpu_custom_call.1} parent=0
    _
  %s7 = ssub.s32 1, %s5
  %s8 = scalar_select 0, %s7, %s5
  $region1: #{tpu_custom_call.1} parent=0
    #allocation2 [shape = 'u8[8192]{0}', space=vmem, size = 0x2000, scoped, tag = 'input window, operand 0, single buffered']
    #allocation3 [shape = 's32[1]{0}', space=sflag, size = 0x4, scoped, tag = 'scoped memory for tpu_custom_call.1']
    #allocation4 [shape = 's32[1]{0}', space=sflag, size = 0x4, scoped, tag = 'scoped memory for tpu_custom_call.1']
    #allocation5 [shape = 'u8[4096]{0}', space=vmem, size = 0x1000, scoped, tag = 'input window, operand 1, single buffered']
    #allocation6 [shape = 's32[1]{0}', space=sflag, size = 0x4, scoped, tag = 'scoped memory for tpu_custom_call.1']
    #allocation7 [shape = 'u8[4096]{0}', space=vmem, size = 0x1000, scoped, tag = 'output window, operand 0, single buffered']
    #allocation8 [shape = 'u8[4096]{0}', space=vmem, size = 0x1000, scoped, tag = 'output window, operand 1, single buffered']
    #allocation9 [shape = 's32[1]{0}', space=sflag, size = 0x4, scoped, tag = 'scoped memory for tpu_custom_call.1']
    %9 = vsyncpa [#allocation3], 0
    %10 = vsyncpa [#allocation6], 0
    %11 = vsyncpa [#allocation4], 0
    %12 = vsyncpa [#allocation9], 0
    // Predicated region
    $region2: #{tpu_custom_call.1} parent=1 // pred_check
      _
    $region3: #{tpu_custom_call.1} parent=1 // pred_check_branch
      %14 = sbr.rel (0) target = $region5
    $region4: #{tpu_custom_call.1} parent=1 // pred_region
      %s16 = ssub.s32 256, 256
      %17 = vsyncadd [#allocation3], %s16
      %s18 = sshll.u32 [#allocation2], 4
      %s19 = int_to_ptr.vmem [resolvable:$true] %s18
      %24 = dma.hbm_to_vmem [thread:$0]  %s0, 256, %s19, [#allocation3], 128, 128, 8
    $region5: #{tpu_custom_call.1} parent=1 // pred_fallthru
      _
    // Predicated region
    $region6: #{tpu_custom_call.1} parent=1 // pred_check
      _
    $region7: #{tpu_custom_call.1} parent=1 // pred_check_branch
      %26 = sbr.rel (0) target = $region9
    $region8: #{tpu_custom_call.1} parent=1 // pred_region
      %s28 = ssub.s32 128, 128
      %29 = vsyncadd [#allocation6], %s28
      %s30 = sshll.u32 [#allocation5], 4
      %s31 = int_to_ptr.vmem [resolvable:$true] %s30
      %36 = dma.hbm_to_vmem [thread:$0]  %s1, 128, %s31, [#allocation6], 64, 64, 4
    $region9: #{tpu_custom_call.1} parent=1 // pred_fallthru
      _
    // Predicated region
    $region10: #{tpu_custom_call.1} parent=1 // pred_check
      _
    $region11: #{tpu_custom_call.1} parent=1 // pred_check_branch
      %38 = sbr.rel (0) target = $region13
    $region12: #{tpu_custom_call.1} parent=1 // pred_region
      %39 = dma.done [#allocation3], 256
    $region13: #{tpu_custom_call.1} parent=1 // pred_fallthru
      _
    // Predicated region
    $region14: #{tpu_custom_call.1} parent=1 // pred_check
      _
    $region15: #{tpu_custom_call.1} parent=1 // pred_check_branch
      %41 = sbr.rel (0) target = $region17
    $region16: #{tpu_custom_call.1} parent=1 // pred_region
      %42 = dma.done [#allocation6], 128
    $region17: #{tpu_custom_call.1} parent=1 // pred_fallthru
      _
    %p43 = scmp.eq.s32.totalorder 0, 0
    // Predicated region
    $region18: #{tpu_custom_call.1} parent=1 // pred_check
      %p44 = pneg %p43
    $region19: #{tpu_custom_call.1} parent=1 // pred_check_branch
      %46 = sbr.rel (%p44) target = $region21
    $region20: #{tpu_custom_call.1} parent=1 // pred_region
      %47 = vst [vmem:[#allocation7] sm:$0xff] 0.0
      %48 = vst [vmem:[#allocation8] sm:$0xff] 0.0
    $region21: #{tpu_custom_call.1} parent=1 // pred_fallthru
      _
    %v49 = vld [vmem:[#allocation2] sm:$0xff]
    %v50 = vld [vmem:[#allocation2 + $0x8] sm:$0xff]
    %v51 = vxor.u32 %v49, 2147483648
    %v52 = vxor.u32 %v50, 2147483648
    %v53 = vmul.f32 %v51, 1.442695
    %v54 = vpow.pop %v53
    %v55 = vmul.f32 %v52, 1.442695
    %v56 = vpow.pop %v55
    %v57 = vadd.f32 %v54, 1.0
    %v58 = vadd.f32 %v56, 1.0
    %v59 = vrcp.pop %v57
    %v60 = vmul.f32 1.0, %v59
    %v61 = vrcp.pop %v58
    %v62 = vmul.f32 1.0, %v61
    %v63 = vld [vmem:[#allocation5] sm:$0xf]
    %v64 = vld [vmem:[#allocation5 + $0x4] sm:$0xf]
    %v65 = vunpack.c.l.bf16 %v63
    %v66 = vunpack.c.l.bf16 %v64
    %v67 = vmul.f32 %v60, %v65
    %v68 = vmul.f32 %v62, %v66
    %v69 = vadd.f32 %v60, %v65
    %v70 = vadd.f32 %v62, %v66
    %v71 = vld [vmem:[#allocation7] sm:$0xff]
    %v72 = vadd.f32 %v67, %v68
    %v73 = vadd.f32 %v71, %v72
    %74 = vst [vmem:[#allocation7] sm:$0xff] %v73
    %v75 = vld [vmem:[#allocation8] sm:$0xff]
    %v76 = vadd.f32 %v69, %v70
    %v77 = vadd.f32 %v75, %v76
    %78 = vst [vmem:[#allocation8] sm:$0xff] %v77
    // Predicated region
    $region22: #{tpu_custom_call.1} parent=1 // pred_check
      _
    $region23: #{tpu_custom_call.1} parent=1 // pred_check_branch
      %80 = sbr.rel (0) target = $region25
    $region24: #{tpu_custom_call.1} parent=1 // pred_region
      %s82 = ssub.s32 128, 128
      %83 = vsyncadd [#allocation4], %s82
      %s85 = sshll.u32 [#allocation7], 4
      %s86 = int_to_ptr.vmem [resolvable:$true] %s85
      %88 = dma.vmem_to_hbm [thread:$0]  %s86, 128, %s2, [#allocation4]
    $region25: #{tpu_custom_call.1} parent=1 // pred_fallthru
      _
    // Predicated region
    $region26: #{tpu_custom_call.1} parent=1 // pred_check
      _
    $region27: #{tpu_custom_call.1} parent=1 // pred_check_branch
      %90 = sbr.rel (0) target = $region29
    $region28: #{tpu_custom_call.1} parent=1 // pred_region
      %s92 = ssub.s32 128, 128
      %93 = vsyncadd [#allocation9], %s92
      %s95 = sshll.u32 [#allocation8], 4
      %s96 = int_to_ptr.vmem [resolvable:$true] %s95
      %98 = dma.vmem_to_hbm [thread:$0]  %s96, 128, %s3, [#allocation9]
    $region29: #{tpu_custom_call.1} parent=1 // pred_fallthru
      _
    // Predicated region
    $region30: #{tpu_custom_call.1} parent=1 // pred_check
      _
    $region31: #{tpu_custom_call.1} parent=1 // pred_check_branch
      %100 = sbr.rel (0) target = $region33
    $region32: #{tpu_custom_call.1} parent=1 // pred_region
      %101 = dma.done [#allocation4], 128
    $region33: #{tpu_custom_call.1} parent=1 // pred_fallthru
      _
    // Predicated region
    $region34: #{tpu_custom_call.1} parent=1 // pred_check
      _
    $region35: #{tpu_custom_call.1} parent=1 // pred_check_branch
      %103 = sbr.rel (0) target = $region37
    $region36: #{tpu_custom_call.1} parent=1 // pred_region
      %104 = dma.done [#allocation9], 128
    $region37: #{tpu_custom_call.1} parent=1 // pred_fallthru
      _
    %105 = vsyncpa [#allocation3], 1
    %106 = vsyncpa [#allocation6], 1
    %107 = vsyncpa [#allocation4], 1
    %108 = vsyncpa [#allocation9], 1

</llo_original>
